<compile_context>
chip_gen: v7x
topology: tpu7x:2x2x1
jax: 0.10.0
libtpu: 0.0.40
codegen_flags: <defaults>
</compile_context>

<pallas_src>
import functools

import jax
import jax.numpy as jnp
from jax import lax
from jax.experimental import pallas as pl
from jax.experimental.pallas import tpu as pltpu

LANE = 128
_WIDTH = 512                     # lane-dense slab width (4 * 128)
_TM = 512                        # row tile for the tiled path -> 1 MiB f32 blocks
_FUSE_MAX_ELEMS = 256 * 1024     # <= 1 MiB f32 slab -> single fused kernel
_VMEM_LIMIT = 32 * 1024 * 1024   # safe on v5e/v6e (128 MiB phys) and v7x (64 MiB phys)


def _to_11(v):
    """Broadcast a rank-0 scalar to a (1, 1) f32 tile for a VMEM store."""
    return jnp.full((1, 1), v, jnp.float32)


# ---------------------------------------------------------------------------
# Slab helper: flatten to a lane-dense (rows, width) view.  Padding (with the
# edge value, which is min/max neutral and sliced off afterwards) only happens
# when the element count is not a multiple of the width.
# ---------------------------------------------------------------------------
def _slab(x_flat):
    total = x_flat.shape[0]
    width = _WIDTH if total >= _WIDTH else LANE
    rows = -(-total // width)
    pad = rows * width - total
    if pad:
        # TODO(synk): ragged tail could be masked fully in-kernel; pad+slice is
        # a fallback that only triggers for odd element counts.
        fill = jnp.full((pad,), x_flat[0], dtype=x_flat.dtype)
        x_flat = jnp.concatenate([x_flat, fill])
    return x_flat.reshape(rows, width), pad


# ---------------------------------------------------------------------------
# Fused kernel (small activations): min/max + running stat + scale + quantize,
# all from a single VMEM-resident copy of x.
# ---------------------------------------------------------------------------
def _fused_quant_act_kernel(bufs_ref, x_ref, o_ref, mn_ref, mx_ref, sc_ref, *,
                            n_levels, momentum, running_stat):
    x = x_ref[...].astype(jnp.float32)
    x_min_buf = bufs_ref[0]
    x_max_buf = bufs_ref[1]

    if running_stat:
        cur_min = jnp.min(x)
        cur_max = jnp.max(x)
        # Provided module uses torch.eq(x_min, x_max).all() as the "first call" test.
        first = x_min_buf == x_max_buf
        if momentum == -1:
            cand_min = jnp.minimum(x_min_buf, cur_min)
            cand_max = jnp.maximum(x_max_buf, cur_max)
        else:
            cand_min = x_min_buf * momentum + cur_min * (1.0 - momentum)
            cand_max = x_max_buf * momentum + cur_max * (1.0 - momentum)
        new_min = jnp.where(first, x_min_buf + cur_min, cand_min)
        new_max = jnp.where(first, x_max_buf + cur_max, cand_max)
    else:
        new_min = x_min_buf
        new_max = x_max_buf

    scale = jnp.maximum(jnp.maximum(jnp.abs(new_min), jnp.abs(new_max)),
                        1e-8) / n_levels
    inv_scale = 1.0 / scale          # exact divide (keep bit-parity with torch)
    q = jnp.clip(jnp.round(x * inv_scale), -n_levels - 1.0, n_levels)
    o_ref[...] = (q * scale).astype(o_ref.dtype)

    mn_ref[...] = _to_11(new_min)
    mx_ref[...] = _to_11(new_max)
    sc_ref[...] = _to_11(scale)


def _fused_quant_act(x2d, bufs, *, activation_bit, momentum, running_stat):
    rows, width = x2d.shape
    n = float(2 ** (activation_bit - 1) - 1)
    kernel = functools.partial(_fused_quant_act_kernel, n_levels=n,
                               momentum=momentum, running_stat=running_stat)
    out2d, mn, mx, sc = pl.pallas_call(
        kernel,
        out_shape=(
            jax.ShapeDtypeStruct((rows, width), x2d.dtype),
            jax.ShapeDtypeStruct((1, 1), jnp.float32),
            jax.ShapeDtypeStruct((1, 1), jnp.float32),
            jax.ShapeDtypeStruct((1, 1), jnp.float32),
        ),
        grid_spec=pltpu.PrefetchScalarGridSpec(
            num_scalar_prefetch=0,
            grid=(1,),
            in_specs=[
                pl.BlockSpec(memory_space=pltpu.MemorySpace.SMEM),  # [x_min, x_max]
                pl.BlockSpec((rows, width), lambda i: (0, 0)),
            ],
            out_specs=[
                pl.BlockSpec((rows, width), lambda i: (0, 0)),
                pl.BlockSpec((1, 1), lambda i: (0, 0)),
                pl.BlockSpec((1, 1), lambda i: (0, 0)),
                pl.BlockSpec((1, 1), lambda i: (0, 0)),
            ],
        ),
        compiler_params=pltpu.CompilerParams(
            dimension_semantics=("arbitrary",),
            vmem_limit_bytes=_VMEM_LIMIT,
        ),
    )(bufs, x2d)
    return out2d, mn[0, 0], mx[0, 0], sc[0, 0]


# ---------------------------------------------------------------------------
# Tiled path, kernel 1: global min/max reduction.
# Grid = (ncores, tiles_per_core); leading axis is "parallel" so v7x's two
# TensorCores each produce a partial (combined in the wrapper).
# ---------------------------------------------------------------------------
def _minmax_kernel(x_ref, mn_ref, mx_ref, acc_mn, acc_mx, *, tm, width, rows):
    i = pl.program_id(0)
    j = pl.program_id(1)
    nj = pl.num_programs(1)

    @pl.when(j == 0)
    def _():
        acc_mn[...] = jnp.full((tm, width), jnp.inf, jnp.float32)
        acc_mx[...] = jnp.full((tm, width), -jnp.inf, jnp.float32)

    blk = x_ref[...].astype(jnp.float32)

    if rows % tm != 0:
        # Mask the ragged last tile (out-of-bounds reads are undefined values).
        row0 = (i * nj + j) * tm
        local = lax.broadcasted_iota(jnp.int32, (tm, width), 0)
        valid = (row0 + local) < rows
        blk_lo = jnp.where(valid, blk, jnp.inf)
        blk_hi = jnp.where(valid, blk, -jnp.inf)
    else:
        blk_lo = blk
        blk_hi = blk

    # Per-tile work stays elementwise on the VPU.
    acc_mn[...] = jnp.minimum(acc_mn[...], blk_lo)
    acc_mx[...] = jnp.maximum(acc_mx[...], blk_hi)

    @pl.when(j == nj - 1)
    def _():
        # One expensive cross-lane/sublane reduce per core, not per tile.
        mn_ref[...] = jnp.full((8, LANE), jnp.min(acc_mn[...]), jnp.float32)
        mx_ref[...] = jnp.full((8, LANE), jnp.max(acc_mx[...]), jnp.float32)


def _pallas_minmax(x2d, *, tm=_TM):
    rows, width = x2d.shape
    n_tiles = pl.cdiv(rows, tm)
    ncores = 2 if (n_tiles % 2 == 0 and n_tiles >= 2) else 1
    g1 = n_tiles // ncores
    kernel = functools.partial(_minmax_kernel, tm=tm, width=width, rows=rows)
    mins, maxs = pl.pallas_call(
        kernel,
        out_shape=(
            jax.ShapeDtypeStruct((ncores * 8, LANE), jnp.float32),
            jax.ShapeDtypeStruct((ncores * 8, LANE), jnp.float32),
        ),
        grid_spec=pltpu.PrefetchScalarGridSpec(
            num_scalar_prefetch=0,
            grid=(ncores, g1),
            in_specs=[pl.BlockSpec((tm, width), lambda i, j: (i * g1 + j, 0))],
            out_specs=[
                pl.BlockSpec((8, LANE), lambda i, j: (i, 0)),
                pl.BlockSpec((8, LANE), lambda i, j: (i, 0)),
            ],
            scratch_shapes=[
                pltpu.VMEM((tm, width), jnp.float32),
                pltpu.VMEM((tm, width), jnp.float32),
            ],
        ),
        compiler_params=pltpu.CompilerParams(
            dimension_semantics=("parallel", "arbitrary"),
            vmem_limit_bytes=_VMEM_LIMIT,
        ),
    )(x2d)
    return jnp.min(mins), jnp.max(maxs)


# ---------------------------------------------------------------------------
# Tiled path, kernel 2: symmetric fake quantization with scale in SMEM.
# ---------------------------------------------------------------------------
def _quant_kernel(scale_ref, x_ref, o_ref, *, n_levels):
    scale = scale_ref[0]
    inv_scale = 1.0 / scale          # exact divide (scalar path)
    q = jnp.clip(jnp.round(x_ref[...].astype(jnp.float32) * inv_scale),
                 -n_levels - 1.0, n_levels)
    o_ref[...] = (q * scale).astype(o_ref.dtype)


def _pallas_quant(x2d, scale, *, activation_bit, tm=_TM):
    rows, width = x2d.shape
    n = float(2 ** (activation_bit - 1) - 1)
    kernel = functools.partial(_quant_kernel, n_levels=n)
    return pl.pallas_call(
        kernel,
        out_shape=jax.ShapeDtypeStruct((rows, width), x2d.dtype),
        grid_spec=pltpu.PrefetchScalarGridSpec(
            num_scalar_prefetch=0,
            grid=(pl.cdiv(rows, tm),),
            in_specs=[
                pl.BlockSpec(memory_space=pltpu.MemorySpace.SMEM),
                pl.BlockSpec((tm, width), lambda i: (i, 0)),
            ],
            out_specs=pl.BlockSpec((tm, width), lambda i: (i, 0)),
        ),
        compiler_params=pltpu.CompilerParams(
            dimension_semantics=("parallel",),
            vmem_limit_bytes=_VMEM_LIMIT,
        ),
    )(scale.reshape(1).astype(jnp.float32), x2d)


# ---------------------------------------------------------------------------
# Functional QuantAct forward (per-tensor, symmetric).
# state = (x_min_buf, x_max_buf), each (1,) float32 (the torch buffers).
# Returns (quantized_output, act_scaling_factor, new_state).
# ---------------------------------------------------------------------------
def quant_act_forward(x, state, *, activation_bit=8, act_range_momentum=0.95,
                      running_stat=True):
    x_min_buf, x_max_buf = state
    x_min_buf = x_min_buf.astype(jnp.float32)
    x_max_buf = x_max_buf.astype(jnp.float32)
    orig_shape = x.shape
    total = x.size

    x2d, pad = _slab(x.reshape(-1))
    rows, width = x2d.shape

    if rows * width <= _FUSE_MAX_ELEMS:
        # Single fused kernel: one HBM read + one HBM write, no scalar glue.
        bufs = jnp.concatenate([x_min_buf.reshape(1), x_max_buf.reshape(1)])
        out2d, new_min, new_max, scale = _fused_quant_act(
            x2d, bufs, activation_bit=activation_bit,
            momentum=act_range_momentum, running_stat=running_stat)
        new_min = new_min.reshape(1)
        new_max = new_max.reshape(1)
        scale = scale.reshape(1)
    else:
        # Tiled path: reduction kernel + quantize kernel (scalar glue is
        # negligible relative to the multi-MiB tensor passes).
        if running_stat:
            cur_min, cur_max = _pallas_minmax(x2d)
            first = jnp.all(x_min_buf == x_max_buf)
            if act_range_momentum == -1:
                cand_min = jnp.minimum(x_min_buf, cur_min)
                cand_max = jnp.maximum(x_max_buf, cur_max)
            else:
                m = act_range_momentum
                cand_min = x_min_buf * m + cur_min * (1.0 - m)
                cand_max = x_max_buf * m + cur_max * (1.0 - m)
            new_min = jnp.where(first, x_min_buf + cur_min, cand_min)
            new_max = jnp.where(first, x_max_buf + cur_max, cand_max)
        else:
            new_min, new_max = x_min_buf, x_max_buf
        n = 2 ** (activation_bit - 1) - 1
        scale = jnp.maximum(jnp.maximum(jnp.abs(new_min), jnp.abs(new_max)),
                            1e-8) / n
        out2d = _pallas_quant(x2d, scale, activation_bit=activation_bit)

    if pad:
        out = out2d.reshape(-1)[:total].reshape(orig_shape)
    else:
        out = out2d.reshape(orig_shape)
    return out, scale, (new_min, new_max)


# ---------------------------------------------------------------------------
# Pure-JAX reference for correctness checking.
# ---------------------------------------------------------------------------
def _reference(x, state, activation_bit=8, momentum=0.95):
    x_min_buf, x_max_buf = state
    xf = x.astype(jnp.float32)
    cur_min, cur_max = jnp.min(xf), jnp.max(xf)
    eq = jnp.all(x_min_buf == x_max_buf)
    if momentum == -1:
        cand_min = jnp.minimum(x_min_buf, cur_min)
        cand_max = jnp.maximum(x_max_buf, cur_max)
    else:
        cand_min = x_min_buf * momentum + cur_min * (1 - momentum)
        cand_max = x_max_buf * momentum + cur_max * (1 - momentum)
    new_min = jnp.where(eq, x_min_buf + cur_min, cand_min)
    new_max = jnp.where(eq, x_max_buf + cur_max, cand_max)
    n = 2 ** (activation_bit - 1) - 1
    scale = jnp.maximum(jnp.maximum(jnp.abs(new_min), jnp.abs(new_max)), 1e-8) / n
    q = jnp.clip(jnp.round(xf * (1.0 / scale)), -n - 1, n)
    return (q * scale).astype(x.dtype), scale, (new_min, new_max)


if __name__ == "__main__":
    quant_act = jax.jit(quant_act_forward)

    def _check(x, state):
        out, scale, new_state = quant_act(x, state)
        jax.block_until_ready((out, scale, new_state))
        ref_out, ref_scale, ref_state = _reference(x, state)
        assert out.shape == x.shape and out.dtype == x.dtype
        assert jnp.allclose(out, ref_out, rtol=1e-6, atol=1e-6)
        assert jnp.allclose(scale, ref_scale, rtol=1e-6, atol=1e-6)
        assert jnp.allclose(new_state[0], ref_state[0], rtol=1e-6, atol=1e-6)
        assert jnp.allclose(new_state[1], ref_state[1], rtol=1e-6, atol=1e-6)

    # Case 1: small NCHW activation, zero-init buffers (first forward) ->
    # fused single-kernel path, "buffers equal" branch.
    x = jax.random.normal(jax.random.PRNGKey(0), (2, 4, 16, 16), dtype=jnp.float32)
    state0 = (jnp.zeros((1,), jnp.float32), jnp.zeros((1,), jnp.float32))
    _check(x, state0)

    # Case 2: larger activation, warm buffers -> tiled path (odd tile count,
    # ragged last tile handled by in-kernel masking), momentum branch.
    x_big = jax.random.normal(jax.random.PRNGKey(1), (8, 64, 36, 32), dtype=jnp.float32)
    state1 = (jnp.array([-2.5], jnp.float32), jnp.array([3.0], jnp.float32))
    _check(x_big, state1)

    # Case 3: tiled path with an even tile count -> exercises the 2-way
    # "parallel" reduction split (both partials combined in the wrapper).
    x_big2 = jax.random.normal(jax.random.PRNGKey(2), (16, 64, 32, 32), dtype=jnp.float32)
    _check(x_big2, state1)

    print("KERNEL_OK")
</pallas_src>

<mosaic_0001>
module attributes {stable_mosaic.version = 11 : i64} {
  func.func @_fused_quant_act_kernel(%arg0: i32, %arg1: memref<2xf32, #tpu.memory_space<smem>>, %arg2: memref<4x512xf32, #tpu.memory_space<vmem>>, %arg3: memref<4x512xf32, #tpu.memory_space<vmem>>, %arg4: memref<1x1xf32, #tpu.memory_space<vmem>>, %arg5: memref<1x1xf32, #tpu.memory_space<vmem>>, %arg6: memref<1x1xf32, #tpu.memory_space<vmem>>) attributes {dimension_semantics = [#tpu.dimension_semantics<arbitrary>], iteration_bounds = array<i64: 1>, scalar_prefetch = 0 : i64, scratch_operands = 0 : i64, tpu.core_type = #tpu.core_type<tc>, window_params = [{transform_indices = @transform_0, window_bounds = array<i64: 2>}, {pipeline_mode = #tpu.pipeline_mode<synchronous>, transform_indices = @transform_1, window_bounds = array<i64: 4, 512>}, {pipeline_mode = #tpu.pipeline_mode<synchronous>, transform_indices = @transform_2, window_bounds = array<i64: 4, 512>}, {pipeline_mode = #tpu.pipeline_mode<synchronous>, transform_indices = @transform_3, window_bounds = array<i64: 1, 1>}, {pipeline_mode = #tpu.pipeline_mode<synchronous>, transform_indices = @transform_4, window_bounds = array<i64: 1, 1>}, {pipeline_mode = #tpu.pipeline_mode<synchronous>, transform_indices = @transform_5, window_bounds = array<i64: 1, 1>}]} {
    %c0 = arith.constant 0 : index
    %c0_0 = arith.constant 0 : index
    %0 = vector.load %arg2[%c0, %c0_0] : memref<4x512xf32, #tpu.memory_space<vmem>>, vector<4x512xf32>
    %c0_1 = arith.constant 0 : index
    %1 = memref.load %arg1[%c0_1] : memref<2xf32, #tpu.memory_space<smem>>
    %c1 = arith.constant 1 : index
    %2 = memref.load %arg1[%c1] : memref<2xf32, #tpu.memory_space<smem>>
    %3 = vector.shape_cast %0 : vector<4x512xf32> to vector<1x4x512xf32>
    %cst = arith.constant dense<0x7F800000> : vector<1xf32>
    %4 = vector.multi_reduction <minimumf>, %3, %cst [1, 2] : vector<1x4x512xf32> to vector<1xf32>
    %5 = vector.shape_cast %4 : vector<1xf32> to vector<1x1x1xf32>
    %6 = vector.extract %5[0, 0, 0] : f32 from vector<1x1x1xf32>
    %7 = vector.shape_cast %0 : vector<4x512xf32> to vector<1x4x512xf32>
    %cst_2 = arith.constant dense<0xFF800000> : vector<1xf32>
    %8 = vector.multi_reduction <maximumf>, %7, %cst_2 [1, 2] : vector<1x4x512xf32> to vector<1xf32>
    %9 = vector.shape_cast %8 : vector<1xf32> to vector<1x1x1xf32>
    %10 = vector.extract %9[0, 0, 0] : f32 from vector<1x1x1xf32>
    %11 = arith.cmpf oeq, %1, %2 : f32
    %cst_3 = arith.constant 0.949999988 : f32
    %12 = arith.mulf %1, %cst_3 : f32
    %cst_4 = arith.constant 5.000000e-02 : f32
    %13 = arith.mulf %6, %cst_4 : f32
    %14 = arith.addf %12, %13 : f32
    %cst_5 = arith.constant 0.949999988 : f32
    %15 = arith.mulf %2, %cst_5 : f32
    %cst_6 = arith.constant 5.000000e-02 : f32
    %16 = arith.mulf %10, %cst_6 : f32
    %17 = arith.addf %15, %16 : f32
    %18 = arith.addf %1, %6 : f32
    %19 = arith.select %11, %18, %14 : f32
    %20 = arith.addf %2, %10 : f32
    %21 = arith.select %11, %20, %17 : f32
    %22 = math.absf %19 : f32
    %23 = math.absf %21 : f32
    %24 = arith.maximumf %22, %23 : f32
    %cst_7 = arith.constant 9.99999993E-9 : f32
    %25 = arith.maximumf %24, %cst_7 : f32
    %cst_8 = arith.constant 1.270000e+02 : f32
    %26 = arith.divf %25, %cst_8 : f32
    %cst_9 = arith.constant 1.000000e+00 : f32
    %27 = arith.divf %cst_9, %26 : f32
    %28 = vector.broadcast %27 : f32 to vector<4x512xf32>
    %29 = arith.mulf %0, %28 : vector<4x512xf32>
    %30 = math.roundeven %29 : vector<4x512xf32>
    %cst_10 = arith.constant -1.280000e+02 : f32
    %cst_11 = arith.constant 1.270000e+02 : f32
    %31 = vector.broadcast %cst_10 : f32 to vector<4x512xf32>
    %32 = arith.maximumf %31, %30 : vector<4x512xf32>
    %33 = vector.broadcast %cst_11 : f32 to vector<4x512xf32>
    %34 = arith.minimumf %33, %32 : vector<4x512xf32>
    %35 = vector.broadcast %26 : f32 to vector<4x512xf32>
    %36 = arith.mulf %34, %35 : vector<4x512xf32>
    %c0_12 = arith.constant 0 : index
    %c0_13 = arith.constant 0 : index
    %37 = vector.load %arg3[%c0_12, %c0_13] : memref<4x512xf32, #tpu.memory_space<vmem>>, vector<4x512xf32>
    tpu.vector_store %arg3[%c0_12, %c0_13], %36 {strides = array<i32>} : memref<4x512xf32, #tpu.memory_space<vmem>>, vector<4x512xf32>,
    %38 = vector.broadcast %19 : f32 to vector<1x1xf32>
    %c0_14 = arith.constant 0 : index
    %c0_15 = arith.constant 0 : index
    %39 = vector.load %arg4[%c0_14, %c0_15] : memref<1x1xf32, #tpu.memory_space<vmem>>, vector<1x1xf32>
    tpu.vector_store %arg4[%c0_14, %c0_15], %38 {strides = array<i32>} : memref<1x1xf32, #tpu.memory_space<vmem>>, vector<1x1xf32>,
    %40 = vector.broadcast %21 : f32 to vector<1x1xf32>
    %c0_16 = arith.constant 0 : index
    %c0_17 = arith.constant 0 : index
    %41 = vector.load %arg5[%c0_16, %c0_17] : memref<1x1xf32, #tpu.memory_space<vmem>>, vector<1x1xf32>
    tpu.vector_store %arg5[%c0_16, %c0_17], %40 {strides = array<i32>} : memref<1x1xf32, #tpu.memory_space<vmem>>, vector<1x1xf32>,
    %42 = vector.broadcast %26 : f32 to vector<1x1xf32>
    %c0_18 = arith.constant 0 : index
    %c0_19 = arith.constant 0 : index
    %43 = vector.load %arg6[%c0_18, %c0_19] : memref<1x1xf32, #tpu.memory_space<vmem>>, vector<1x1xf32>
    tpu.vector_store %arg6[%c0_18, %c0_19], %42 {strides = array<i32>} : memref<1x1xf32, #tpu.memory_space<vmem>>, vector<1x1xf32>,
    return
  }
  func.func @transform_0(%arg0: i32) -> i32 {
    %c0_i32 = arith.constant 0 : i32
    %c0_i32_0 = arith.constant 0 : i32
    return %c0_i32 : i32
  }
  func.func @transform_1(%arg0: i32) -> (i32, i32) {
    %c0_i32 = arith.constant 0 : i32
    %c0_i32_0 = arith.constant 0 : i32
    %c0_i32_1 = arith.constant 0 : i32
    return %c0_i32, %c0_i32_0 : i32, i32
  }
  func.func @transform_2(%arg0: i32) -> (i32, i32) {
    %c0_i32 = arith.constant 0 : i32
    %c0_i32_0 = arith.constant 0 : i32
    %c0_i32_1 = arith.constant 0 : i32
    return %c0_i32, %c0_i32_0 : i32, i32
  }
  func.func @transform_3(%arg0: i32) -> (i32, i32) {
    %c0_i32 = arith.constant 0 : i32
    %c0_i32_0 = arith.constant 0 : i32
    %c0_i32_1 = arith.constant 0 : i32
    return %c0_i32, %c0_i32_0 : i32, i32
  }
  func.func @transform_4(%arg0: i32) -> (i32, i32) {
    %c0_i32 = arith.constant 0 : i32
    %c0_i32_0 = arith.constant 0 : i32
    %c0_i32_1 = arith.constant 0 : i32
    return %c0_i32, %c0_i32_0 : i32, i32
  }
  func.func @transform_5(%arg0: i32) -> (i32, i32) {
    %c0_i32 = arith.constant 0 : i32
    %c0_i32_0 = arith.constant 0 : i32
    %c0_i32_1 = arith.constant 0 : i32
    return %c0_i32, %c0_i32_0 : i32, i32
  }
}

</mosaic_0001>

<llo_original>
// kernel: quant_act_forward.1
$region0: #{quant_act_forward.1}
  #allocation0 [shape = 'u32[]', space=smem, size = 0x4, offset = 0x4, fixed_abs, tag = 'smem constant byte address 0x4 - core index']
  #allocation1 [shape = 'u32[144,128]{1,0:T(1,128)}', space=vmem, size = 0x12000, scoped, tag = 'internal scratch']
  %s0 = inlined_call_operand.vmem [shape: f32[2], index: 0, kind: input, shape index: {}]
  %s1 = inlined_call_operand.vmem [shape: f32[4,512], index: 1, kind: input, shape index: {}]
  %s2 = inlined_call_operand.vmem [shape: f32[4,512], index: 2, kind: output, shape index: {0}]
  %s3 = inlined_call_operand.hbm [shape: f32[1,1], index: 3, kind: output, shape index: {1}]
  %s4 = inlined_call_operand.hbm [shape: f32[1,1], index: 4, kind: output, shape index: {2}]
  %s5 = inlined_call_operand.hbm [shape: f32[1,1], index: 5, kind: output, shape index: {3}]
  %6 = xla_tuple %s2, %s3, %s4, %s5
  %s7 = sld [smem:[#allocation0]]
  $region46: #{quant_act_forward.1} parent=0
    _
  %s9 = ssub.s32 1, %s7
  %s10 = scalar_select 0, %s9, %s7
  $region1: #{quant_act_forward.1} parent=0
    #allocation2 [shape = 'u8[512]{0}', space=smem, size = 0x200, scoped, tag = 'input window, operand 0, single buffered']
    #allocation3 [shape = 's32[1]{0}', space=sflag, size = 0x4, scoped, tag = 'scoped memory for quant_act_forward.1']
    #allocation4 [shape = 's32[1]{0}', space=sflag, size = 0x4, scoped, tag = 'scoped memory for quant_act_forward.1']
    #allocation5 [shape = 'u8[512]{0}', space=vmem, size = 0x400, scoped, tag = 'output window, operand 1, single buffered']
    #allocation6 [shape = 'u8[512]{0}', space=vmem, size = 0x400, scoped, tag = 'output window, operand 2, single buffered']
    #allocation7 [shape = 's32[1]{0}', space=sflag, size = 0x4, scoped, tag = 'scoped memory for quant_act_forward.1']
    #allocation8 [shape = 'u8[512]{0}', space=vmem, size = 0x400, scoped, tag = 'output window, operand 3, single buffered']
    %11 = vsyncpa [#allocation4], 0
    %12 = vsyncpa [#allocation3], 0
    %13 = vsyncpa [#allocation7], 0
    // Predicated region
    $region2: #{quant_act_forward.1} parent=1 // pred_check
      _
    $region3: #{quant_act_forward.1} parent=1 // pred_check_branch
      %15 = sbr.rel (0) target = $region5
    $region4: #{quant_act_forward.1} parent=1 // pred_region
      %s17 = ssub.s32 16, 16
      %18 = vsyncadd [#allocation4], %s17
      %s20 = sshll.u32 %s0, 4
      %s21 = int_to_ptr.vmem [resolvable:$true] %s20
      %23 = dma.vmem_to_smem %s21, 16, [#allocation2], [#allocation4]
    $region5: #{quant_act_forward.1} parent=1 // pred_fallthru
      _
    // Predicated region
    $region6: #{quant_act_forward.1} parent=1 // pred_check
      _
    $region7: #{quant_act_forward.1} parent=1 // pred_check_branch
      %25 = sbr.rel (0) target = $region9
    $region8: #{quant_act_forward.1} parent=1 // pred_region
      _
    $region9: #{quant_act_forward.1} parent=1 // pred_fallthru
      _
    // Predicated region
    $region10: #{quant_act_forward.1} parent=1 // pred_check
      _
    $region11: #{quant_act_forward.1} parent=1 // pred_check_branch
      %27 = sbr.rel (0) target = $region13
    $region12: #{quant_act_forward.1} parent=1 // pred_region
      %28 = dma.done [#allocation4], 16
    $region13: #{quant_act_forward.1} parent=1 // pred_fallthru
      _
    %29 = sfence
    %v30 = vld [vmem:[%s1] sm:$0xff]
    %v31 = vld [vmem:[%s1 + $0x8] sm:$0xff]
    %s32 = sld [smem:[#allocation2]]
    %s33 = sld [smem:[#allocation2 + $0x1]]
    %v36 = vcombine.high %v30, %v30
    %v37 = vcombine.high %v31, %v31
    %vm40 = vcmask 1043456
    %v41 = vsel %vm40, %v30, inf
    %v42 = vsel %vm40, %v36, inf
    %v43 = vsel %vm40, %v31, inf
    %v44 = vsel %vm40, %v37, inf
    %v45 = vmin.f32 %v41, %v42
    %v46 = vmin.f32 %v43, %v44
    %v47 = vmin.f32 %v45, %v46
    %48 = vmin.xlane.f32.xlu0 %v47
    %v49 = vpop.xlane.xlu0 %48
    %v50 = vrot.slane %v49, 4
    %v51 = vmin.f32 %v49, %v50
    %v52 = vrot.slane %v51, 2
    %v53 = vmin.f32 %v51, %v52
    %v54 = vrot.slane %v53, 1
    %v55 = vmin.f32 %v53, %v54
    %s56 = vtos %v55
    %v57 = vsel %vm40, %v30, -inf
    %v58 = vsel %vm40, %v36, -inf
    %v59 = vsel %vm40, %v31, -inf
    %v60 = vsel %vm40, %v37, -inf
    %v61 = vmax.f32 %v57, %v58
    %v62 = vmax.f32 %v59, %v60
    %v63 = vmax.f32 %v61, %v62
    %64 = vmax.xlane.f32.xlu0 %v63
    %v65 = vpop.xlane.xlu0 %64
    %v66 = vrot.slane %v65, 4
    %v67 = vmax.f32 %v65, %v66
    %v68 = vrot.slane %v67, 2
    %v69 = vmax.f32 %v67, %v68
    %v70 = vrot.slane %v69, 1
    %v71 = vmax.f32 %v69, %v70
    %s72 = vtos %v71
    %p73 = scmp.eq.f32.partialorder %s32, %s33
    %s74 = smul.f32 %s32, 0.95
    %s75 = smul.f32 %s56, 0.05
    %s76 = sadd.f32 %s74, %s75
    %s77 = smul.f32 %s33, 0.95
    %s78 = smul.f32 %s72, 0.05
    %s79 = sadd.f32 %s77, %s78
    %s80 = sadd.f32 %s32, %s56
    %s81 = scalar_select %p73, %s80, %s76
    %s82 = sadd.f32 %s33, %s72
    %s83 = scalar_select %p73, %s82, %s79
    %s84 = sand.u32 2147483647, %s81
    %s85 = sand.u32 2147483647, %s83
    %s86 = smax.f32 %s84, %s85
    %s87 = smax.f32 %s86, 1e-08
    %v88 = vrcp.pop 127.0
    %s89 = vtos %v88
    %s90 = smul.f32 %s87, %s89
    %v91 = vstv %s90
    %v92 = vrcp.pop %v91
    %s93 = vtos %v92
    %v94 = vstv %s93
    %v95 = vmul.f32 %v30, %v94
    %v96 = vmul.f32 %v31, %v94
    %v97 = vround.ne.pseudo %v95
    %v98 = vround.ne.pseudo %v96
    %v99 = vmax.f32 %v97, -128.0
    %v100 = vmax.f32 %v98, -128.0
    %v101 = vmin.f32 %v99, 127.0
    %v102 = vmin.f32 %v100, 127.0
    %v103 = vstv %s90
    %v104 = vmul.f32 %v101, %v103
    %v105 = vmul.f32 %v102, %v103
    %106 = vst [vmem:[%s2] sm:$0xff] %v104
    %107 = vst [vmem:[%s2 + $0x8] sm:$0xff] %v105
    %v108 = vstv %s81
    %vm109 = vcmask 0
    %110 = vst.msk [vmem:[#allocation5] sm:$0x1] %vm109, %v108
    %v111 = vstv %s83
    %112 = vst.msk [vmem:[#allocation6] sm:$0x1] %vm109, %v111
    %113 = vst.msk [vmem:[#allocation8] sm:$0x1] %vm109, %v103
    // Predicated region
    $region14: #{quant_act_forward.1} parent=1 // pred_check
      _
    $region15: #{quant_act_forward.1} parent=1 // pred_check_branch
      %115 = sbr.rel (0) target = $region17
    $region16: #{quant_act_forward.1} parent=1 // pred_region
      _
    $region17: #{quant_act_forward.1} parent=1 // pred_fallthru
      _
    // Predicated region
    $region18: #{quant_act_forward.1} parent=1 // pred_check
      _
    $region19: #{quant_act_forward.1} parent=1 // pred_check_branch
      %117 = sbr.rel (0) target = $region21
    $region20: #{quant_act_forward.1} parent=1 // pred_region
      %s119 = ssub.s32 16, 16
      %120 = vsyncadd [#allocation3], %s119
      %s122 = sshll.u32 [#allocation5], 4
      %s123 = int_to_ptr.vmem [resolvable:$true] %s122
      %125 = dma.vmem_to_hbm [thread:$0]  %s123, 16, %s3, [#allocation3]
    $region21: #{quant_act_forward.1} parent=1 // pred_fallthru
      _
    // Predicated region
    $region22: #{quant_act_forward.1} parent=1 // pred_check
      _
    $region23: #{quant_act_forward.1} parent=1 // pred_check_branch
      %127 = sbr.rel (0) target = $region25
    $region24: #{quant_act_forward.1} parent=1 // pred_region
      %s129 = ssub.s32 16, 16
      %130 = vsyncadd [#allocation7], %s129
      %s132 = sshll.u32 [#allocation6], 4
      %s133 = int_to_ptr.vmem [resolvable:$true] %s132
      %135 = dma.vmem_to_hbm [thread:$0]  %s133, 16, %s4, [#allocation7]
    $region25: #{quant_act_forward.1} parent=1 // pred_fallthru
      _
    // Predicated region
    $region26: #{quant_act_forward.1} parent=1 // pred_check
      _
    $region27: #{quant_act_forward.1} parent=1 // pred_check_branch
      %137 = sbr.rel (0) target = $region29
    $region28: #{quant_act_forward.1} parent=1 // pred_region
      %s139 = ssub.s32 16, 16
      %140 = vsyncadd [#allocation7], %s139
      %s142 = sshll.u32 [#allocation8], 4
      %s143 = int_to_ptr.vmem [resolvable:$true] %s142
      %145 = dma.vmem_to_hbm [thread:$0]  %s143, 16, %s5, [#allocation7]
    $region29: #{quant_act_forward.1} parent=1 // pred_fallthru
      _
    // Predicated region
    $region30: #{quant_act_forward.1} parent=1 // pred_check
      _
    $region31: #{quant_act_forward.1} parent=1 // pred_check_branch
      %147 = sbr.rel (0) target = $region33
    $region32: #{quant_act_forward.1} parent=1 // pred_region
      _
    $region33: #{quant_act_forward.1} parent=1 // pred_fallthru
      _
    // Predicated region
    $region34: #{quant_act_forward.1} parent=1 // pred_check
      _
    $region35: #{quant_act_forward.1} parent=1 // pred_check_branch
      %149 = sbr.rel (0) target = $region37
    $region36: #{quant_act_forward.1} parent=1 // pred_region
      %150 = dma.done [#allocation3], 16
    $region37: #{quant_act_forward.1} parent=1 // pred_fallthru
      _
    // Predicated region
    $region38: #{quant_act_forward.1} parent=1 // pred_check
      _
    $region39: #{quant_act_forward.1} parent=1 // pred_check_branch
      %152 = sbr.rel (0) target = $region41
    $region40: #{quant_act_forward.1} parent=1 // pred_region
      %153 = dma.done [#allocation7], 16
    $region41: #{quant_act_forward.1} parent=1 // pred_fallthru
      _
    // Predicated region
    $region42: #{quant_act_forward.1} parent=1 // pred_check
      _
    $region43: #{quant_act_forward.1} parent=1 // pred_check_branch
      %155 = sbr.rel (0) target = $region45
    $region44: #{quant_act_forward.1} parent=1 // pred_region
      %156 = dma.done [#allocation7], 16
    $region45: #{quant_act_forward.1} parent=1 // pred_fallthru
      _
    %157 = vsyncpa [#allocation3], 1
    %158 = vsyncpa [#allocation7], 1
    %159 = vsyncpa [#allocation4], 1

</llo_original>
